<compile_context>
chip_gen: v7x
topology: tpu7x:2x2x1
jax: 0.10.0
libtpu: 0.0.40
codegen_flags: <defaults>
</compile_context>

<pallas_src>
import math

import jax
import jax.numpy as jnp
from jax.experimental import pallas as pl
from jax.experimental.pallas import tpu as pltpu


def _round_up(x, m):
    return ((x + m - 1) // m) * m


# --------------------------------------------------------------------------
# Kernel 1: fold the symmetric normalization into the adjacency (one pass).
#   Ahat[i, j] = norm[i] * A[i, j] * norm[j]
# --------------------------------------------------------------------------
def _scale_adj_kernel(adj_ref, nc_ref, nr_ref, ahat_ref):
    ahat_ref[...] = nc_ref[...] * adj_ref[...] * nr_ref[...]


def _scale_adjacency(adj_p, norm_p, tile):
    np_, _ = adj_p.shape
    return pl.pallas_call(
        _scale_adj_kernel,
        out_shape=jax.ShapeDtypeStruct((np_, np_), jnp.float32),
        grid=(np_ // tile, np_ // tile),
        in_specs=[
            pl.BlockSpec((tile, tile), lambda i, j: (i, j)),
            pl.BlockSpec((tile, 1), lambda i, j: (i, 0)),   # norm as column
            pl.BlockSpec((1, tile), lambda i, j: (0, j)),   # norm as row
        ],
        out_specs=pl.BlockSpec((tile, tile), lambda i, j: (i, j)),
        compiler_params=pltpu.CompilerParams(
            dimension_semantics=("parallel", "parallel")),
    )(adj_p, norm_p.reshape(np_, 1), norm_p.reshape(1, np_))


# --------------------------------------------------------------------------
# Kernel 2 (tiled path): one propagation hop  h <- Ahat @ h
# Tiled (TM x TK) x (TK x DP) matmul, VMEM f32 accumulator, reduction axis last.
# --------------------------------------------------------------------------
def _hop_matmul_kernel(a_ref, h_ref, o_ref, acc_ref):
    @pl.when(pl.program_id(1) == 0)
    def _init():
        acc_ref[...] = jnp.zeros_like(acc_ref)

    acc_ref[...] += jnp.dot(a_ref[...], h_ref[...],
                            preferred_element_type=jnp.float32)

    @pl.when(pl.program_id(1) == pl.num_programs(1) - 1)
    def _store():
        o_ref[...] = acc_ref[...]


def _hop_matmul(ahat, h, tile):
    np_, _ = ahat.shape
    dp = h.shape[1]
    return pl.pallas_call(
        _hop_matmul_kernel,
        out_shape=jax.ShapeDtypeStruct((np_, dp), jnp.float32),
        grid_spec=pltpu.PrefetchScalarGridSpec(
            num_scalar_prefetch=0,
            grid=(np_ // tile, np_ // tile),
            in_specs=[
                pl.BlockSpec((tile, tile), lambda i, kk: (i, kk)),
                pl.BlockSpec((tile, dp), lambda i, kk: (kk, 0)),
            ],
            out_specs=pl.BlockSpec((tile, dp), lambda i, kk: (i, 0)),
            scratch_shapes=[pltpu.VMEM((tile, dp), jnp.float32)],
        ),
        compiler_params=pltpu.CompilerParams(
            dimension_semantics=("parallel", "arbitrary")),
        cost_estimate=pl.CostEstimate(
            flops=2 * np_ * np_ * dp,
            transcendentals=0,
            bytes_accessed=4 * (np_ * np_ + 2 * np_ * dp)),
    )(ahat, h)


# --------------------------------------------------------------------------
# Kernel 3 (tiled path): hop-attention gating.
#   out[n, :] = sum_i sigmoid(sum_d H_i[n, d] * s[d]) * H_i[n, :]
# Score is a VPU multiply + XLU lane-reduce (no tiny MXU matvecs); s is a [1, D] row.
# --------------------------------------------------------------------------
def _make_gate_kernel(num_hops):
    def gate_kernel(*refs):
        s_row = refs[0][...]                   # [1, DP]
        out_ref = refs[1 + num_hops]
        acc = jnp.zeros(out_ref.shape, jnp.float32)
        for i in range(num_hops):
            h = refs[1 + i][...]               # [TM, DP]
            score = jnp.sum(h * s_row, axis=-1, keepdims=True)  # [TM, 1]
            acc = acc + jax.nn.sigmoid(score) * h
        out_ref[...] = acc
    return gate_kernel


def _gate(hops, s_row, tile):
    np_, dp = hops[0].shape
    num_hops = len(hops)
    return pl.pallas_call(
        _make_gate_kernel(num_hops),
        out_shape=jax.ShapeDtypeStruct((np_, dp), jnp.float32),
        grid=(np_ // tile,),
        in_specs=[pl.BlockSpec((1, dp), lambda i: (0, 0))]
        + [pl.BlockSpec((tile, dp), lambda i: (i, 0)) for _ in range(num_hops)],
        out_specs=pl.BlockSpec((tile, dp), lambda i: (i, 0)),
        compiler_params=pltpu.CompilerParams(dimension_semantics=("parallel",)),
    )(s_row, *hops)


# --------------------------------------------------------------------------
# Fused kernel (small/medium graphs): Ahat stays resident in VMEM across all
# k hops and the gating stage -> adjacency is read from HBM exactly once.
# --------------------------------------------------------------------------
def _make_fused_kernel(k):
    def fused_kernel(ahat_ref, feats_ref, s_ref, out_ref):
        ahat = ahat_ref[...]                   # [NP, NP], resident for all hops
        s_row = s_ref[...]                     # [1, DP]
        h = feats_ref[...]                     # [NP, DP]
        hops = [h]
        for _ in range(k):                     # static unroll
            h = jnp.dot(ahat, h, preferred_element_type=jnp.float32)
            hops.append(h)
        acc = jnp.zeros(out_ref.shape, jnp.float32)
        for hh in hops:
            score = jnp.sum(hh * s_row, axis=-1, keepdims=True)
            acc = acc + jax.nn.sigmoid(score) * hh
        out_ref[...] = acc
    return fused_kernel


def _fused_dagnn(ahat, feats_p, s_row, k):
    np_, dp = feats_p.shape
    return pl.pallas_call(
        _make_fused_kernel(k),
        out_shape=jax.ShapeDtypeStruct((np_, dp), jnp.float32),
        grid=(1,),
        in_specs=[
            pl.BlockSpec((np_, np_), lambda i: (0, 0)),
            pl.BlockSpec((np_, dp), lambda i: (0, 0)),
            pl.BlockSpec((1, dp), lambda i: (0, 0)),
        ],
        out_specs=pl.BlockSpec((np_, dp), lambda i: (0, 0)),
        compiler_params=pltpu.CompilerParams(
            dimension_semantics=("arbitrary",),
            vmem_limit_bytes=48 * 1024 * 1024),
        cost_estimate=pl.CostEstimate(
            flops=2 * k * np_ * np_ * dp,
            transcendentals=(k + 1) * np_,
            bytes_accessed=4 * (np_ * np_ + 3 * np_ * dp)),
    )(ahat, feats_p, s_row)


# --------------------------------------------------------------------------
# Wrapper: padding, normalization glue, path selection.
# --------------------------------------------------------------------------
def dagnn_conv(adj, feats, s, k=4, *, tile_n=128, max_fused_n=1024):
    """DAGNNConv forward.

    adj:   [N, N] f32 dense adjacency, adj[v, u] = 1 for edge u -> v
    feats: [N, D] f32 node features
    s:     [D, 1] f32 hop-attention parameter
    k:     number of propagation hops
    tile_n: MXU tile (128 matches v5e; use 256 on v6e/v7x)
    max_fused_n: padded-N threshold for the VMEM-resident fused path
    """
    n, d = feats.shape

    # In-degree normalization (one-pass wrapper glue). Faithful to the module:
    # torch.pow(degs, -0.5) -> isolated nodes give inf, same as the reference.
    degs = jnp.sum(adj, axis=1)
    norm = jnp.power(degs, -0.5).astype(jnp.float32)

    np_ = _round_up(n, tile_n)          # rows: multiple of the MXU tile
    dp = _round_up(max(d, 1), 128)      # lane-dense feature dim

    adj_p = jnp.zeros((np_, np_), jnp.float32).at[:n, :n].set(adj.astype(jnp.float32))
    norm_p = jnp.zeros((np_,), jnp.float32).at[:n].set(norm)   # pad rows get norm=0
    feats_p = jnp.zeros((np_, dp), jnp.float32).at[:n, :d].set(feats.astype(jnp.float32))
    s_row = jnp.zeros((1, dp), jnp.float32).at[0, :d].set(
        s.astype(jnp.float32).reshape(-1))

    # Ahat = diag(norm) @ A @ diag(norm): fold the 2k per-hop norm multiplies into one pass.
    ahat = _scale_adjacency(adj_p, norm_p, tile_n)

    if np_ <= max_fused_n:
        # Adjacency read from HBM once; all hops + gating in one kernel.
        out_p = _fused_dagnn(ahat, feats_p, s_row, k)
    else:
        # Large graphs: stream Ahat per hop with tiled, pipelined MXU matmuls.
        hops = [feats_p]
        h = feats_p
        for _ in range(k):
            h = _hop_matmul(ahat, h, tile_n)
            hops.append(h)
        out_p = _gate(hops, s_row, tile_n)

    return out_p[:n, :d]


# --------------------------------------------------------------------------
# Pure-JAX reference (mirrors the PyTorch forward exactly) for validation.
# --------------------------------------------------------------------------
def dagnn_reference(adj, feats, s, k):
    degs = jnp.sum(adj, axis=1)
    norm = jnp.power(degs, -0.5)[:, None]
    results = [feats]
    h = feats
    for _ in range(k):
        h = h * norm
        h = adj @ h
        h = h * norm
        results.append(h)
    H = jnp.stack(results, axis=1)                      # [N, k+1, D]
    S = jax.nn.sigmoid(jnp.matmul(H, s))                # [N, k+1, 1]
    out = jnp.matmul(jnp.transpose(S, (0, 2, 1)), H)    # [N, 1, D]
    return jnp.squeeze(out, axis=1)


if __name__ == "__main__":
    N, D, K = 200, 48, 4

    key = jax.random.PRNGKey(0)
    k_adj, k_feat, k_s = jax.random.split(key, 3)

    # Random directed graph + self-loops (every in-degree >= 1, so norm is finite).
    adj = (jax.random.uniform(k_adj, (N, N)) < 0.05).astype(jnp.float32)
    adj = jnp.maximum(adj, jnp.eye(N, dtype=jnp.float32))

    feats = jax.random.normal(k_feat, (N, D), dtype=jnp.float32)

    # Parameter s: xavier_uniform_ with gain = calculate_gain('sigmoid') = 1.0,
    # shape (D, 1) -> bound = sqrt(6 / (D + 1))
    bound = math.sqrt(6.0 / (D + 1))
    s_param = jax.random.uniform(
        k_s, (D, 1), minval=-bound, maxval=bound, dtype=jnp.float32)

    # Fused path (Ahat resident in VMEM) and tiled streaming path on the same inputs.
    out_fused = dagnn_conv(adj, feats, s_param, k=K)
    out_tiled = dagnn_conv(adj, feats, s_param, k=K, max_fused_n=0)
    ref = dagnn_reference(adj, feats, s_param, K)
    jax.block_until_ready((out_fused, out_tiled, ref))

    assert out_fused.shape == (N, D) and out_tiled.shape == (N, D)
    assert bool(jnp.all(jnp.isfinite(out_fused)))
    assert bool(jnp.allclose(out_fused, out_tiled, rtol=1e-3, atol=1e-3))
    assert bool(jnp.allclose(out_fused, ref, rtol=5e-2, atol=5e-2))
    print("KERNEL_OK")
</pallas_src>

<mosaic_0001>
module attributes {stable_mosaic.version = 11 : i64} {
  func.func @_scale_adj_kernel(%arg0: i32, %arg1: i32, %arg2: memref<128x128xf32, #tpu.memory_space<vmem>>, %arg3: memref<128x1xf32, #tpu.memory_space<vmem>>, %arg4: memref<1x128xf32, #tpu.memory_space<vmem>>, %arg5: memref<128x128xf32, #tpu.memory_space<vmem>>) attributes {dimension_semantics = [#tpu.dimension_semantics<parallel>, #tpu.dimension_semantics<parallel>], iteration_bounds = array<i64: 2, 2>, scalar_prefetch = 0 : i64, scratch_operands = 0 : i64, tpu.core_type = #tpu.core_type<tc>, window_params = [{transform_indices = @transform_0, window_bounds = array<i64: 128, 128>}, {transform_indices = @transform_1, window_bounds = array<i64: 128, 1>}, {transform_indices = @transform_2, window_bounds = array<i64: 1, 128>}, {transform_indices = @transform_3, window_bounds = array<i64: 128, 128>}]} {
    %c0 = arith.constant 0 : index
    %c0_0 = arith.constant 0 : index
    %0 = vector.load %arg3[%c0, %c0_0] : memref<128x1xf32, #tpu.memory_space<vmem>>, vector<128x1xf32>
    %c0_1 = arith.constant 0 : index
    %c0_2 = arith.constant 0 : index
    %1 = vector.load %arg2[%c0_1, %c0_2] : memref<128x128xf32, #tpu.memory_space<vmem>>, vector<128x128xf32>
    %2 = vector.broadcast %0 : vector<128x1xf32> to vector<128x128xf32>
    %3 = arith.mulf %2, %1 : vector<128x128xf32>
    %c0_3 = arith.constant 0 : index
    %c0_4 = arith.constant 0 : index
    %4 = vector.load %arg4[%c0_3, %c0_4] : memref<1x128xf32, #tpu.memory_space<vmem>>, vector<1x128xf32>
    %5 = vector.broadcast %4 : vector<1x128xf32> to vector<128x128xf32>
    %6 = arith.mulf %3, %5 : vector<128x128xf32>
    %c0_5 = arith.constant 0 : index
    %c0_6 = arith.constant 0 : index
    %7 = vector.load %arg5[%c0_5, %c0_6] : memref<128x128xf32, #tpu.memory_space<vmem>>, vector<128x128xf32>
    tpu.vector_store %arg5[%c0_5, %c0_6], %6 {strides = array<i32>} : memref<128x128xf32, #tpu.memory_space<vmem>>, vector<128x128xf32>,
    return
  }
  func.func @transform_0(%arg0: i32, %arg1: i32) -> (i32, i32) {
    %c0_i32 = arith.constant 0 : i32
    return %arg0, %arg1 : i32, i32
  }
  func.func @transform_1(%arg0: i32, %arg1: i32) -> (i32, i32) {
    %c0_i32 = arith.constant 0 : i32
    %c0_i32_0 = arith.constant 0 : i32
    return %arg0, %c0_i32 : i32, i32
  }
  func.func @transform_2(%arg0: i32, %arg1: i32) -> (i32, i32) {
    %c0_i32 = arith.constant 0 : i32
    %c0_i32_0 = arith.constant 0 : i32
    return %c0_i32, %arg1 : i32, i32
  }
  func.func @transform_3(%arg0: i32, %arg1: i32) -> (i32, i32) {
    %c0_i32 = arith.constant 0 : i32
    return %arg0, %arg1 : i32, i32
  }
}

</mosaic_0001>

<llo_original>
// kernel: tpu_custom_call.1
$region0: #{tpu_custom_call.1}
  #allocation0 [shape = 'u32[]', space=smem, size = 0x4, offset = 0x4, fixed_abs, tag = 'smem constant byte address 0x4 - core index']
  #allocation1 [shape = 'u32[144,128]{1,0:T(1,128)}', space=vmem, size = 0x12000, scoped, tag = 'internal scratch']
  %s0 = inlined_call_operand.hbm [shape: f32[256,256], index: 0, kind: input, shape index: {}]
  %s1 = inlined_call_operand.vmem [shape: f32[256,1], index: 1, kind: input, shape index: {}]
  %s2 = inlined_call_operand.vmem [shape: f32[1,256], index: 2, kind: input, shape index: {}]
  %s3 = inlined_call_operand.hbm [shape: f32[256,256], index: 3, kind: output, shape index: {}]
  %s4 = sld [smem:[#allocation0]]
  $region49: #{tpu_custom_call.1} parent=0
    _
  %s6 = ssub.s32 1, %s4
  %s7 = scalar_select 0, %s6, %s4
  $region1: #{tpu_custom_call.1} parent=0
    #allocation2 [shape = 'u8[131072]{0}', space=vmem, size = 0x20000, scoped, tag = 'input window, operand 0']
    #allocation3 [shape = 's32[2]{0}', space=sflag, size = 0x8, scoped, tag = 'scoped memory for tpu_custom_call.1']
    #allocation4 [shape = 's32[2]{0}', space=sflag, size = 0x8, scoped, tag = 'scoped memory for tpu_custom_call.1']
    #allocation5 [shape = 'u8[131072]{0}', space=vmem, size = 0x20000, scoped, tag = 'output window, operand 0']
    %8 = vsyncpa [#allocation3], 0
    %s9 = scalar_lea.sflag [#allocation3], 1
    %10 = vsyncpa %s9, 0
    %11 = vsyncpa [#allocation4], 0
    %s12 = scalar_lea.sflag [#allocation4], 1
    %13 = vsyncpa %s12, 0
    loop: start=0, step=1, limit=6
    $region2: #{tpu_custom_call.1} parent=1 // loop_pre_header
      _
    $region3: #{tpu_custom_call.1} parent=1 // loop_header
      %s15 = sphi 0, %s19
      %p16 = scmp.ge.s32.totalorder %s15, 6
      %s22 = sphi 0, %s34
      %s23 = sphi 0, %s30
      %s24 = sphi 0, %s22
      %s25 = sphi 0, %s23
      %s26 = sphi 0, %s24
      %s27 = sphi 0, %s25
      %s39 = sphi 0, %s41
      %s42 = sphi 0, %s39
      %s43 = sphi 0, %s42
      %s59 = sphi 0, %s43
      %s65 = sphi 0, %s67
      %s68 = sphi 0, %s65
      %s69 = sphi 0, %s68
      %s85 = sphi 0, %s69
      %s91 = sphi 0, %s93
      %s94 = sphi 0, %s91
      %s95 = sphi 0, %s94
      %s111 = sphi 0, %s95
      %s119 = sphi 0, %s121
      %s122 = sphi 0, %s119
      %s123 = sphi 0, %s122
      %s139 = sphi 0, %s123
    $region4: #{tpu_custom_call.1} parent=1 // loop_header_branch
      %18 = sbr.rel (%p16) target = $region8
    $region5: #{tpu_custom_call.1} parent=1 // loop_body
      %s20 = ssub.s32 %s15, 1
      %s21 = ssub.s32 %s15, 2
      %s28 = sadd.s32 1, %s23
      %p29 = scmp.ge.s32.totalorder %s28, 2
      %s30 = scalar_select %p29, 0, %s28
      %s31 = sadd.s32 1, %s22
      %s32 = scalar_select %p29, %s31, %s22
      %p33 = scmp.ge.s32.totalorder %s32, 2
      %s34 = scalar_select %p33, 0, %s32
      %s35 = ssub.s32 %s22, %s34
      %s36 = ssub.s32 %s23, %s30
      %s37 = sor.u32 %s35, %s36
      %p38 = scmp.eq.s32.totalorder %s37, 0
      %s40 = sadd.s32 %s39, 1
      %s41 = scalar_select %p38, %s39, %s40
      %p44 = pneg %p38
      %p45 = scmp.eq.s32.totalorder %s15, 3
      %p46 = por %p44, %p45
      %p47 = scmp.ne.s32.totalorder %s39, %s42
      %p48 = scmp.eq.s32.totalorder %s15, 0
      %p49 = por %p47, %p48
      %p50 = scmp.ne.s32.totalorder %s39, %s42
      %p51 = scmp.eq.s32.totalorder %s20, 3
      %p52 = por %p50, %p51
      %p53 = scmp.ne.s32.totalorder %s42, %s43
      %p54 = scmp.eq.s32.totalorder %s20, 0
      %p55 = por %p53, %p54
      %p56 = scmp.ne.s32.totalorder %s42, %s43
      %p57 = scmp.eq.s32.totalorder %s21, 3
      %p58 = por %p56, %p57
      %p60 = scmp.ne.s32.totalorder %s43, %s59
      %p61 = scmp.eq.s32.totalorder %s21, 0
      %p62 = por %p60, %p61
      %s63 = ssub.s32 %s22, %s34
      %p64 = scmp.eq.s32.totalorder %s63, 0
      %s66 = sadd.s32 %s65, 1
      %s67 = scalar_select %p64, %s65, %s66
      %p70 = pneg %p64
      %p71 = scmp.eq.s32.totalorder %s15, 3
      %p72 = por %p70, %p71
      %p73 = scmp.ne.s32.totalorder %s65, %s68
      %p74 = scmp.eq.s32.totalorder %s15, 0
      %p75 = por %p73, %p74
      %p76 = scmp.ne.s32.totalorder %s65, %s68
      %p77 = scmp.eq.s32.totalorder %s20, 3
      %p78 = por %p76, %p77
      %p79 = scmp.ne.s32.totalorder %s68, %s69
      %p80 = scmp.eq.s32.totalorder %s20, 0
      %p81 = por %p79, %p80
      %p82 = scmp.ne.s32.totalorder %s68, %s69
      %p83 = scmp.eq.s32.totalorder %s21, 3
      %p84 = por %p82, %p83
      %p86 = scmp.ne.s32.totalorder %s69, %s85
      %p87 = scmp.eq.s32.totalorder %s21, 0
      %p88 = por %p86, %p87
      %s89 = ssub.s32 %s23, %s30
      %p90 = scmp.eq.s32.totalorder %s89, 0
      %s92 = sadd.s32 %s91, 1
      %s93 = scalar_select %p90, %s91, %s92
      %p96 = pneg %p90
      %p97 = scmp.eq.s32.totalorder %s15, 3
      %p98 = por %p96, %p97
      %p99 = scmp.ne.s32.totalorder %s91, %s94
      %p100 = scmp.eq.s32.totalorder %s15, 0
      %p101 = por %p99, %p100
      %p102 = scmp.ne.s32.totalorder %s91, %s94
      %p103 = scmp.eq.s32.totalorder %s20, 3
      %p104 = por %p102, %p103
      %p105 = scmp.ne.s32.totalorder %s94, %s95
      %p106 = scmp.eq.s32.totalorder %s20, 0
      %p107 = por %p105, %p106
      %p108 = scmp.ne.s32.totalorder %s94, %s95
      %p109 = scmp.eq.s32.totalorder %s21, 3
      %p110 = por %p108, %p109
      %p112 = scmp.ne.s32.totalorder %s95, %s111
      %p113 = scmp.eq.s32.totalorder %s21, 0
      %p114 = por %p112, %p113
      %s115 = ssub.s32 %s22, %s34
      %s116 = ssub.s32 %s23, %s30
      %s117 = sor.u32 %s115, %s116
      %p118 = scmp.eq.s32.totalorder %s117, 0
      %s120 = sadd.s32 %s119, 1
      %s121 = scalar_select %p118, %s119, %s120
      %p124 = pneg %p118
      %p125 = scmp.eq.s32.totalorder %s15, 3
      %p126 = por %p124, %p125
      %p127 = scmp.ne.s32.totalorder %s119, %s122
      %p128 = scmp.eq.s32.totalorder %s15, 0
      %p129 = por %p127, %p128
      %p130 = scmp.ne.s32.totalorder %s119, %s122
      %p131 = scmp.eq.s32.totalorder %s20, 3
      %p132 = por %p130, %p131
      %p133 = scmp.ne.s32.totalorder %s122, %s123
      %p134 = scmp.eq.s32.totalorder %s20, 0
      %p135 = por %p133, %p134
      %p136 = scmp.ne.s32.totalorder %s122, %s123
      %p137 = scmp.eq.s32.totalorder %s21, 3
      %p138 = por %p136, %p137
      %p140 = scmp.ne.s32.totalorder %s123, %s139
      %p141 = scmp.eq.s32.totalorder %s21, 0
      %p142 = por %p140, %p141
      %p143 = scmp.le.s32.totalorder 1, %s15
      %p144 = scmp.lt.s32.totalorder %s15, 5
      %p145 = pnand %p143, %p144
      %p146 = pneg %p145
      // Predicated region
      $region9: #{tpu_custom_call.1} parent=5 // pred_check
        _
      $region10: #{tpu_custom_call.1} parent=5 // pred_check_branch
        %148 = sbr.rel (%p145) target = $region12
      $region11: #{tpu_custom_call.1} parent=5 // pred_region
        %s149 = ssub.s32 %s15, 1
      $region12: #{tpu_custom_call.1} parent=5 // pred_fallthru
        _
      %p150 = scmp.lt.s32.totalorder %s15, 4
      // Predicated region
      $region13: #{tpu_custom_call.1} parent=5 // pred_check
        %p151 = pneg %p150
      $region14: #{tpu_custom_call.1} parent=5 // pred_check_branch
        %153 = sbr.rel (%p151) target = $region16
      $region15: #{tpu_custom_call.1} parent=5 // pred_region
        // Predicated region
        $region17: #{tpu_custom_call.1} parent=15 // pred_check
          %p154 = pneg %p49
        $region18: #{tpu_custom_call.1} parent=15 // pred_check_branch
          %156 = sbr.rel (%p154) target = $region20
        $region19: #{tpu_custom_call.1} parent=15 // pred_region
          %s157 = sand.u32 %s39, 1
          %s158 = scalar_lea.sflag [#allocation3], %s157
          %s159 = sand.u32 %s39, 1
          %s160 = smul.addr %s159, 128
          %s161 = scalar_lea.vmem [#allocation2], %s160
          %s162 = smul.u32 16, %s22
          %s164 = ssub.s32 2048, 2048
          %165 = vsyncadd %s158, %s164
          %s166 = smul.addr %s162, 2
          %s167 = sadd.s32 %s23, %s166
          %s168 = smul.addr %s167, 128
          %s169 = scalar_lea.hbm %s0, %s168
          %s170 = sshll.u32 %s161, 4
          %s171 = int_to_ptr.vmem [resolvable:$true] %s170
          %176 = dma.hbm_to_vmem [thread:$0]  %s169, 2048, %s171, %s158, 256, 128, 8
        $region20: #{tpu_custom_call.1} parent=15 // pred_fallthru
          _
        // Predicated region
        $region21: #{tpu_custom_call.1} parent=15 // pred_check
          %p177 = pneg %p75
        $region22: #{tpu_custom_call.1} parent=15 // pred_check_branch
          %179 = sbr.rel (%p177) target = $region24
        $region23: #{tpu_custom_call.1} parent=15 // pred_region
          %s180 = smul.u32 16, %s22
          %p181 = scmp.lt.s32.totalorder %s180, 31
          %s182 = scalar_select %p181, %s180, 31
          %s183 = smul.addr %s182, 8
          %s184 = scalar_lea.vmem %s1, %s183
          %s185 = smul.u32 16, %s22
        $region24: #{tpu_custom_call.1} parent=15 // pred_fallthru
          _
        // Predicated region
        $region25: #{tpu_custom_call.1} parent=15 // pred_check
          %p186 = pneg %p101
        $region26: #{tpu_custom_call.1} parent=15 // pred_check_branch
          %188 = sbr.rel (%p186) target = $region28
        $region27: #{tpu_custom_call.1} parent=15 // pred_region
          %p189 = scmp.lt.s32.totalorder %s23, 1
          %s190 = scalar_select %p189, %s23, 1
          %s191 = scalar_lea.vmem %s2, %s190
        $region28: #{tpu_custom_call.1} parent=15 // pred_fallthru
          _
      $region16: #{tpu_custom_call.1} parent=5 // pred_fallthru
        _
      %p192 = scmp.le.s32.totalorder 1, %s15
      %p193 = scmp.lt.s32.totalorder %s15, 5
      %p194 = pnand %p192, %p193
      %p195 = pneg %p194
      // Predicated region
      $region29: #{tpu_custom_call.1} parent=5 // pred_check
        _
      $region30: #{tpu_custom_call.1} parent=5 // pred_check_branch
        %197 = sbr.rel (%p194) target = $region32
      $region31: #{tpu_custom_call.1} parent=5 // pred_region
        %s198 = ssub.s32 %s15, 1
        %s199 = sand.u32 %s42, 1
        %s200 = scalar_lea.sflag [#allocation3], %s199
        %s201 = sand.u32 %s42, 1
        %s202 = smul.addr %s201, 128
        %s203 = scalar_lea.vmem [#allocation2], %s202
        // Predicated region
        $region33: #{tpu_custom_call.1} parent=31 // pred_check
          %p204 = pneg %p55
        $region34: #{tpu_custom_call.1} parent=31 // pred_check_branch
          %206 = sbr.rel (%p204) target = $region36
        $region35: #{tpu_custom_call.1} parent=31 // pred_region
          %207 = dma.done %s200, 2048
        $region36: #{tpu_custom_call.1} parent=31 // pred_fallthru
          _
        %s208 = sand.u32 %s42, 1
        %s209 = scalar_lea.sflag [#allocation3], %s208
        %s210 = sand.u32 %s42, 1
        %s211 = smul.addr %s210, 128
        %s212 = scalar_lea.vmem [#allocation2], %s211
        %p213 = pneg %p55
        %p214 = pneg %p52
        %s215 = smul.u32 16, %s24
        %p216 = scmp.lt.s32.totalorder %s215, 31
        %s217 = scalar_select %p216, %s215, 31
        %s218 = smul.addr %s217, 8
        %s219 = scalar_lea.vmem %s1, %s218
        %p220 = pneg %p81
        %p221 = pneg %p78
        %p222 = scmp.lt.s32.totalorder %s25, 1
        %s223 = scalar_select %p222, %s25, 1
        %s224 = scalar_lea.vmem %s2, %s223
        %p225 = pneg %p107
        %p226 = pneg %p104
        %p227 = pneg %p135
        %p228 = pneg %p132
        %s229 = sand.u32 %s122, 1
        %s230 = scalar_lea.sflag [#allocation4], %s229
        %s231 = sand.u32 %s122, 1
        %s232 = smul.addr %s231, 128
        %s233 = scalar_lea.vmem [#allocation5], %s232
        %s234 = smul.u32 16, %s24
        %s235 = smul.u32 16, %s24
        %p236 = scmp.lt.s32.totalorder %s235, 31
        %s237 = scalar_select %p236, %s235, 31
        %s238 = smul.addr %s237, 8
        %s239 = scalar_lea.vmem %s1, %s238
        %s240 = smul.u32 16, %s24
        %p241 = scmp.lt.s32.totalorder %s25, 1
        %s242 = scalar_select %p241, %s25, 1
        %s243 = scalar_lea.vmem %s2, %s242
        %s244 = smul.u32 16, %s24
        %v245 = vld [vmem:[%s239] sm:$0xff]
        %v246 = vld [vmem:[%s239 + $0x8] sm:$0xff]
        %v247 = vld [vmem:[%s239 + $0x10] sm:$0xff]
        %v248 = vld [vmem:[%s239 + $0x18] sm:$0xff]
        %v249 = vld [vmem:[%s239 + $0x20] sm:$0xff]
        %v250 = vld [vmem:[%s239 + $0x28] sm:$0xff]
        %v251 = vld [vmem:[%s239 + $0x30] sm:$0xff]
        %v252 = vld [vmem:[%s239 + $0x38] sm:$0xff]
        %v253 = vld [vmem:[%s239 + $0x40] sm:$0xff]
        %v254 = vld [vmem:[%s239 + $0x48] sm:$0xff]
        %v255 = vld [vmem:[%s239 + $0x50] sm:$0xff]
        %v256 = vld [vmem:[%s239 + $0x58] sm:$0xff]
        %v257 = vld [vmem:[%s239 + $0x60] sm:$0xff]
        %v258 = vld [vmem:[%s239 + $0x68] sm:$0xff]
        %v259 = vld [vmem:[%s239 + $0x70] sm:$0xff]
        %v260 = vld [vmem:[%s239 + $0x78] sm:$0xff]
        %v261 = vld [vmem:[%s203] sm:$0xff]
        %v262 = vld [vmem:[%s203 + $0x8] sm:$0xff]
        %v263 = vld [vmem:[%s203 + $0x10] sm:$0xff]
        %v264 = vld [vmem:[%s203 + $0x18] sm:$0xff]
        %v265 = vld [vmem:[%s203 + $0x20] sm:$0xff]
        %v266 = vld [vmem:[%s203 + $0x28] sm:$0xff]
        %v267 = vld [vmem:[%s203 + $0x30] sm:$0xff]
        %v268 = vld [vmem:[%s203 + $0x38] sm:$0xff]
        %v269 = vld [vmem:[%s203 + $0x40] sm:$0xff]
        %v270 = vld [vmem:[%s203 + $0x48] sm:$0xff]
        %v271 = vld [vmem:[%s203 + $0x50] sm:$0xff]
        %v272 = vld [vmem:[%s203 + $0x58] sm:$0xff]
        %v273 = vld [vmem:[%s203 + $0x60] sm:$0xff]
        %v274 = vld [vmem:[%s203 + $0x68] sm:$0xff]
        %v275 = vld [vmem:[%s203 + $0x70] sm:$0xff]
        %v276 = vld [vmem:[%s203 + $0x78] sm:$0xff]
        %278 = vset.pattern.permute.xlu0 0
        %279 = vperm.xlu0 %278, %v245
        %v280 = vpop.permute.xlu0 %279
        %283 = vset.pattern.permute.xlu0 0
        %284 = vperm.xlu0 %283, %v246
        %v285 = vpop.permute.xlu0 %284
        %288 = vset.pattern.permute.xlu0 0
        %289 = vperm.xlu0 %288, %v247
        %v290 = vpop.permute.xlu0 %289
        %293 = vset.pattern.permute.xlu0 0
        %294 = vperm.xlu0 %293, %v248
        %v295 = vpop.permute.xlu0 %294
        %298 = vset.pattern.permute.xlu0 0
        %299 = vperm.xlu0 %298, %v249
        %v300 = vpop.permute.xlu0 %299
        %303 = vset.pattern.permute.xlu0 0
        %304 = vperm.xlu0 %303, %v250
        %v305 = vpop.permute.xlu0 %304
        %308 = vset.pattern.permute.xlu0 0
        %309 = vperm.xlu0 %308, %v251
        %v310 = vpop.permute.xlu0 %309
        %313 = vset.pattern.permute.xlu0 0
        %314 = vperm.xlu0 %313, %v252
        %v315 = vpop.permute.xlu0 %314
        %318 = vset.pattern.permute.xlu0 0
        %319 = vperm.xlu0 %318, %v253
        %v320 = vpop.permute.xlu0 %319
        %323 = vset.pattern.permute.xlu0 0
        %324 = vperm.xlu0 %323, %v254
        %v325 = vpop.permute.xlu0 %324
        %328 = vset.pattern.permute.xlu0 0
        %329 = vperm.xlu0 %328, %v255
        %v330 = vpop.permute.xlu0 %329
        %333 = vset.pattern.permute.xlu0 0
        %334 = vperm.xlu0 %333, %v256
        %v335 = vpop.permute.xlu0 %334
        %338 = vset.pattern.permute.xlu0 0
        %339 = vperm.xlu0 %338, %v257
        %v340 = vpop.permute.xlu0 %339
        %343 = vset.pattern.permute.xlu0 0
        %344 = vperm.xlu0 %343, %v258
        %v345 = vpop.permute.xlu0 %344
        %348 = vset.pattern.permute.xlu0 0
        %349 = vperm.xlu0 %348, %v259
        %v350 = vpop.permute.xlu0 %349
        %353 = vset.pattern.permute.xlu0 0
        %354 = vperm.xlu0 %353, %v260
        %v355 = vpop.permute.xlu0 %354
        %v357 = vmul.f32 %v280, %v261
        %v358 = vmul.f32 %v285, %v262
        %v359 = vmul.f32 %v290, %v263
        %v360 = vmul.f32 %v295, %v264
        %v361 = vmul.f32 %v300, %v265
        %v362 = vmul.f32 %v305, %v266
        %v363 = vmul.f32 %v310, %v267
        %v364 = vmul.f32 %v315, %v268
        %v365 = vmul.f32 %v320, %v269
        %v366 = vmul.f32 %v325, %v270
        %v367 = vmul.f32 %v330, %v271
        %v368 = vmul.f32 %v335, %v272
        %v369 = vmul.f32 %v340, %v273
        %v370 = vmul.f32 %v345, %v274
        %v371 = vmul.f32 %v350, %v275
        %v372 = vmul.f32 %v355, %v276
        %v373 = vld [vmem:[%s243] sm:$0x1]
        %v375 = vlaneseq
        %v376 = vshrl.u32 %v375, 7
        %v377 = vsub.s32 0, %v376
        %v378 = vrot.slane %v373, %v377
        %v380 = vmul.f32 %v357, %v378
        %v381 = vmul.f32 %v358, %v378
        %v382 = vmul.f32 %v359, %v378
        %v383 = vmul.f32 %v360, %v378
        %v384 = vmul.f32 %v361, %v378
        %v385 = vmul.f32 %v362, %v378
        %v386 = vmul.f32 %v363, %v378
        %v387 = vmul.f32 %v364, %v378
        %v388 = vmul.f32 %v365, %v378
        %v389 = vmul.f32 %v366, %v378
        %v390 = vmul.f32 %v367, %v378
        %v391 = vmul.f32 %v368, %v378
        %v392 = vmul.f32 %v369, %v378
        %v393 = vmul.f32 %v370, %v378
        %v394 = vmul.f32 %v371, %v378
        %v395 = vmul.f32 %v372, %v378
        %396 = vst [vmem:[%s233] sm:$0xff] %v380
        %397 = vst [vmem:[%s233 + $0x8] sm:$0xff] %v381
        %398 = vst [vmem:[%s233 + $0x10] sm:$0xff] %v382
        %399 = vst [vmem:[%s233 + $0x18] sm:$0xff] %v383
        %400 = vst [vmem:[%s233 + $0x20] sm:$0xff] %v384
        %401 = vst [vmem:[%s233 + $0x28] sm:$0xff] %v385
        %402 = vst [vmem:[%s233 + $0x30] sm:$0xff] %v386
        %403 = vst [vmem:[%s233 + $0x38] sm:$0xff] %v387
        %404 = vst [vmem:[%s233 + $0x40] sm:$0xff] %v388
        %405 = vst [vmem:[%s233 + $0x48] sm:$0xff] %v389
        %406 = vst [vmem:[%s233 + $0x50] sm:$0xff] %v390
        %407 = vst [vmem:[%s233 + $0x58] sm:$0xff] %v391
        %408 = vst [vmem:[%s233 + $0x60] sm:$0xff] %v392
        %409 = vst [vmem:[%s233 + $0x68] sm:$0xff] %v393
        %410 = vst [vmem:[%s233 + $0x70] sm:$0xff] %v394
        %411 = vst [vmem:[%s233 + $0x78] sm:$0xff] %v395
        %s412 = sand.u32 %s122, 1
        %s413 = scalar_lea.sflag [#allocation4], %s412
        %s414 = sand.u32 %s122, 1
        %s415 = smul.addr %s414, 128
        %s416 = scalar_lea.vmem [#allocation5], %s415
        // Predicated region
        $region37: #{tpu_custom_call.1} parent=31 // pred_check
          %p417 = pneg %p132
        $region38: #{tpu_custom_call.1} parent=31 // pred_check_branch
          %419 = sbr.rel (%p417) target = $region40
        $region39: #{tpu_custom_call.1} parent=31 // pred_region
          %s420 = smul.u32 16, %s24
          %s422 = ssub.s32 2048, 2048
          %423 = vsyncadd %s413, %s422
          %s424 = smul.addr %s420, 2
          %s425 = sadd.s32 %s25, %s424
          %s426 = smul.addr %s425, 128
          %s427 = scalar_lea.hbm %s3, %s426
          %s428 = sshll.u32 %s416, 4
          %s429 = int_to_ptr.vmem [resolvable:$true] %s428
          %434 = dma.vmem_to_hbm [thread:$0]  %s429, 2048, %s427, %s413, 128, 256, 8
        $region40: #{tpu_custom_call.1} parent=31 // pred_fallthru
          _
      $region32: #{tpu_custom_call.1} parent=5 // pred_fallthru
        _
      %p435 = scmp.le.s32.totalorder 2, %s15
      // Predicated region
      $region41: #{tpu_custom_call.1} parent=5 // pred_check
        %p436 = pneg %p435
      $region42: #{tpu_custom_call.1} parent=5 // pred_check_branch
        %438 = sbr.rel (%p436) target = $region44
      $region43: #{tpu_custom_call.1} parent=5 // pred_region
        %s439 = ssub.s32 %s15, 2
        // Predicated region
        $region45: #{tpu_custom_call.1} parent=43 // pred_check
          %p440 = pneg %p138
        $region46: #{tpu_custom_call.1} parent=43 // pred_check_branch
          %442 = sbr.rel (%p440) target = $region48
        $region47: #{tpu_custom_call.1} parent=43 // pred_region
          %s443 = sand.u32 %s123, 1
          %s444 = scalar_lea.sflag [#allocation4], %s443
          %s445 = sand.u32 %s123, 1
          %s446 = smul.addr %s445, 128
          %s447 = scalar_lea.vmem [#allocation5], %s446
          %448 = dma.done %s444, 2048
        $region48: #{tpu_custom_call.1} parent=43 // pred_fallthru
          _
      $region44: #{tpu_custom_call.1} parent=5 // pred_fallthru
        _
    $region6: #{tpu_custom_call.1} parent=1 // loop_footer
      %s19 = sadd.s32 1, %s15
    $region7: #{tpu_custom_call.1} parent=1 // loop_footer_branch
      %14 = sbr.rel target = $region3
    $region8: #{tpu_custom_call.1} parent=1 // loop_exit
      _
    %449 = vsyncpa [#allocation3], 1
    %s450 = scalar_lea.sflag [#allocation3], 1
    %451 = vsyncpa %s450, 1
    %452 = vsyncpa [#allocation4], 1
    %s453 = scalar_lea.sflag [#allocation4], 1
    %454 = vsyncpa %s453, 1

</llo_original>
